<compile_context>
chip_gen: v6e
topology: v6e:2x2x1
jax: 0.10.0
libtpu: 0.0.40
codegen_flags: <defaults>
</compile_context>

<pallas_src>
import jax
import jax.numpy as jnp
from jax.experimental import pallas as pl
from jax.experimental.pallas import tpu as pltpu

_MASK_CONST = 1e10
_LANE = 128
_SUBLANE = 8
# Below this many elements the custom-call / per-grid-step overhead dominates;
# let XLA fuse the 3-op slice/mul/sub instead.
_SMALL_INPUT_ELEMENTS = 1 << 18


def _round_up(x: int, m: int) -> int:
    return ((x + m - 1) // m) * m


def _compute_dtype(dtype):
    """Promote only when 1e10 overflows the input's dynamic range.

    float16 (max ~65504) -> float32.  bfloat16 shares f32's exponent range so
    it stays in bf16 (native VALU on v6e/v7x, half the vreg footprint)."""
    if jnp.issubdtype(dtype, jnp.floating) and float(jnp.finfo(dtype).max) < _MASK_CONST:
        return jnp.float32
    return dtype


# ---------------------------------------------------------------------------
# Kernels
# ---------------------------------------------------------------------------

def _action_kernel_split(lo_ref, hi_ref, o_ref):
    """Fast path: halves delivered as separate lane-dense tiles by the DMA."""
    cd = _compute_dtype(lo_ref.dtype)
    out = hi_ref[...].astype(cd) - lo_ref[...].astype(cd) * jnp.asarray(_MASK_CONST, cd)
    o_ref[...] = out.astype(o_ref.dtype)


def _action_kernel_fused(f_ref, o_ref):
    """Fallback: full-width (tile_b, 2A) tile, halves sliced in-kernel.

    Only used when Pallas is forced on a lane-sparse (A % 128 != 0) shape."""
    a = o_ref.shape[-1]
    cd = _compute_dtype(f_ref.dtype)
    f = f_ref[...]
    out = f[:, a:].astype(cd) - f[:, :a].astype(cd) * jnp.asarray(_MASK_CONST, cd)
    o_ref[...] = out.astype(o_ref.dtype)


# ---------------------------------------------------------------------------
# Tiling / VMEM planning
# ---------------------------------------------------------------------------

def _vmem_plan():
    """Return (tile working-set budget, scoped-vmem limit) in bytes, gated by
    the chip generation (v5e/v6e: 128 MiB physical VMEM, v7x: 64 MiB/TC)."""
    physical = 128 * 1024 * 1024
    try:
        physical = int(pltpu.get_tpu_info().vmem_capacity_bytes)
    except Exception:
        pass  # keep conservative default
    budget = min(physical // 3, 32 * 1024 * 1024)      # double-buffered tiles
    limit = min(physical - (8 << 20), budget * 2)      # headroom, < physical
    return budget, limit


def _choose_tile_b(bs: int, action_dim: int, itemsize: int, budget_bytes: int) -> int:
    """Pick a batch tile:
      * multi-MiB so DMA time dominates the ~0.35 us per-grid-step cost,
      * double-buffered in+out working set under the VMEM budget,
      * >= 4 blocks for large batches so v7x's two TensorCores both get work.
    """
    per_row_bytes = 3 * action_dim * itemsize            # 2 input halves + 1 output
    max_rows = max(_SUBLANE, budget_bytes // (2 * per_row_bytes))  # x2: double-buffer
    tile = max(_SUBLANE, (max_rows // _SUBLANE) * _SUBLANE)

    # Split into >=4 blocks when the batch is big enough that each block still
    # moves >= ~1 MiB (keeps the grid-step overhead amortized).
    min_blocks = 4
    min_rows_per_block = max(_SUBLANE,
                             _round_up(pl.cdiv(1 << 20, per_row_bytes), _SUBLANE))
    if bs >= min_blocks * min_rows_per_block:
        tile = min(tile, max(min_rows_per_block,
                             _round_up(pl.cdiv(bs, min_blocks), _SUBLANE)))

    if bs <= tile:
        # Single block spanning the whole batch: "equal to full array dim"
        # satisfies the (8,128) rule even if bs is not a multiple of 8.
        return bs
    return tile


# ---------------------------------------------------------------------------
# pallas_call wrappers
# ---------------------------------------------------------------------------

def _action_net_pallas_split(features: jax.Array) -> jax.Array:
    bs, dad = features.shape
    a = dad // 2
    budget, vmem_limit = _vmem_plan()
    tile_b = _choose_tile_b(bs, a, features.dtype.itemsize, budget)
    grid = (pl.cdiv(bs, tile_b),)

    return pl.pallas_call(
        _action_kernel_split,
        out_shape=jax.ShapeDtypeStruct((bs, a), features.dtype),
        grid_spec=pl.GridSpec(
            grid=grid,
            in_specs=[
                # Low half  (columns [0, A)):   block column index 0.
                pl.BlockSpec((tile_b, a), lambda i: (i, 0)),
                # High half (columns [A, 2A)):  block column index 1.
                pl.BlockSpec((tile_b, a), lambda i: (i, 1)),
            ],
            out_specs=pl.BlockSpec((tile_b, a), lambda i: (i, 0)),
        ),
        compiler_params=pltpu.CompilerParams(
            dimension_semantics=("parallel",),   # independent batch tiles
            vmem_limit_bytes=int(vmem_limit),
        ),
    )(features, features)


def _action_net_pallas_fused(features: jax.Array) -> jax.Array:
    bs, dad = features.shape
    a = dad // 2
    budget, vmem_limit = _vmem_plan()
    tile_b = _choose_tile_b(bs, a, features.dtype.itemsize, budget)
    grid = (pl.cdiv(bs, tile_b),)

    return pl.pallas_call(
        _action_kernel_fused,
        out_shape=jax.ShapeDtypeStruct((bs, a), features.dtype),
        grid_spec=pl.GridSpec(
            grid=grid,
            # Feature axis kept whole (== full array dim) to satisfy the
            # (8,128) rule for arbitrary action_dim.
            in_specs=[pl.BlockSpec((tile_b, dad), lambda i: (i, 0))],
            out_specs=pl.BlockSpec((tile_b, a), lambda i: (i, 0)),
        ),
        compiler_params=pltpu.CompilerParams(
            dimension_semantics=("parallel",),
            vmem_limit_bytes=int(vmem_limit),
        ),
    )(features)


def action_net_ref(features: jax.Array) -> jax.Array:
    """Pure-JAX reference (also the XLA-fused fallback path)."""
    a = features.shape[1] // 2
    return features[:, a:] - features[:, :a] * _MASK_CONST


def action_net_forward(features: jax.Array, *, force_pallas: bool = False) -> jax.Array:
    """Forward pass of Action_net: features[:, A:] - features[:, :A] * 1e10."""
    if features.ndim != 2:
        raise ValueError(f"expected 2-D features, got shape {features.shape}")
    bs, dad = features.shape
    if dad % 2 != 0:
        raise ValueError(f"feature dim must be even (2 * action_dim), got {dad}")
    a = dad // 2
    lane_dense = (a % _LANE == 0)

    if not force_pallas:
        if bs * dad < _SMALL_INPUT_ELEMENTS or not lane_dense:
            # Tiny input, or lane-sparse output (A not a multiple of 128):
            # masked stores / per-step overhead mean a standalone Pallas
            # kernel cannot beat XLA fusion here.
            return action_net_ref(features)

    if lane_dense:
        return _action_net_pallas_split(features)
    return _action_net_pallas_fused(features)


if __name__ == "__main__":
    key = jax.random.PRNGKey(0)

    # Small shape consistent with the module: bs=2, double_action_dim=32.
    # Forces the (fallback) Pallas kernel so it is exercised at test size.
    bs, dad = 2, 32
    features = jax.random.normal(key, (bs, dad), dtype=jnp.float32)
    out = jax.block_until_ready(action_net_forward(features, force_pallas=True))
    ref = action_net_ref(features)
    assert out.shape == (bs, dad // 2)
    assert jnp.allclose(out, ref, rtol=1e-6, atol=1e-3), "mismatch (small/fused)"

    # Larger, lane-dense shape exercising the optimized two-in-spec path
    # (batch-tiled, >=4 parallel blocks, split-halves kernel).
    key2 = jax.random.PRNGKey(0)
    bs2, dad2 = 2048, 512  # action_dim = 256 (multiple of 128)
    features2 = jax.random.normal(key2, (bs2, dad2), dtype=jnp.float32)
    out2 = jax.block_until_ready(action_net_forward(features2))
    ref2 = action_net_ref(features2)
    assert out2.shape == (bs2, dad2 // 2)
    assert jnp.allclose(out2, ref2, rtol=1e-6, atol=1e-3), "mismatch (split path)"

    print("KERNEL_OK")
</pallas_src>

<mosaic_0001>
module attributes {stable_mosaic.version = 11 : i64} {
  func.func @_action_kernel_fused(%arg0: i32, %arg1: memref<2x32xf32, #tpu.memory_space<vmem>>, %arg2: memref<2x16xf32, #tpu.memory_space<vmem>>) attributes {dimension_semantics = [#tpu.dimension_semantics<parallel>], iteration_bounds = array<i64: 1>, scalar_prefetch = 0 : i64, scratch_operands = 0 : i64, tpu.core_type = #tpu.core_type<tc>, window_params = [{transform_indices = @transform_0, window_bounds = array<i64: 2, 32>}, {transform_indices = @transform_1, window_bounds = array<i64: 2, 16>}]} {
    %c0 = arith.constant 0 : index
    %c0_0 = arith.constant 0 : index
    %0 = vector.load %arg1[%c0, %c0_0] : memref<2x32xf32, #tpu.memory_space<vmem>>, vector<2x32xf32>
    %1 = vector.extract_strided_slice %0 {offsets = [0, 16], sizes = [2, 16], strides = [1, 1]} : vector<2x32xf32> to vector<2x16xf32>
    %2 = vector.extract_strided_slice %0 {offsets = [0, 0], sizes = [2, 16], strides = [1, 1]} : vector<2x32xf32> to vector<2x16xf32>
    %cst = arith.constant 1.000000e+10 : f32
    %3 = vector.broadcast %cst : f32 to vector<2x16xf32>
    %4 = arith.mulf %2, %3 : vector<2x16xf32>
    %5 = arith.subf %1, %4 : vector<2x16xf32>
    %c0_1 = arith.constant 0 : index
    %c0_2 = arith.constant 0 : index
    %6 = vector.load %arg2[%c0_1, %c0_2] : memref<2x16xf32, #tpu.memory_space<vmem>>, vector<2x16xf32>
    tpu.vector_store %arg2[%c0_1, %c0_2], %5 {strides = array<i32>} : memref<2x16xf32, #tpu.memory_space<vmem>>, vector<2x16xf32>,
    return
  }
  func.func @transform_0(%arg0: i32) -> (i32, i32) {
    %c0_i32 = arith.constant 0 : i32
    %c0_i32_0 = arith.constant 0 : i32
    return %arg0, %c0_i32 : i32, i32
  }
  func.func @transform_1(%arg0: i32) -> (i32, i32) {
    %c0_i32 = arith.constant 0 : i32
    %c0_i32_0 = arith.constant 0 : i32
    return %arg0, %c0_i32 : i32, i32
  }
}

</mosaic_0001>

<llo_original>
// kernel: tpu_custom_call.1
$region0: #{tpu_custom_call.1}
  #allocation0 [shape = 'u32[]', space=smem, size = 0x4, offset = 0x4, fixed_abs, tag = 'smem constant byte address 0x4 - core index']
  #allocation1 [shape = 'u32[144,128]{1,0:T(1,128)}', space=vmem, size = 0x12000, scoped, tag = 'internal scratch']
  %s0 = inlined_call_operand.hbm [shape: f32[2,32], index: 0, kind: input, shape index: {}]
  %s1 = inlined_call_operand.hbm [shape: f32[2,16], index: 1, kind: output, shape index: {}]
  %s2 = sld [smem:[#allocation0]]
  $region18: #{tpu_custom_call.1} parent=0
    _
  %s4 = ssub.s32 1, %s2
  %s5 = scalar_select 0, %s4, %s2
  $region1: #{tpu_custom_call.1} parent=0
    #allocation2 [shape = 'u8[1024]{0}', space=vmem, size = 0x400, scoped, tag = 'input window, operand 0, single buffered']
    #allocation3 [shape = 's32[1]{0}', space=sflag, size = 0x4, scoped, tag = 'scoped memory for tpu_custom_call.1']
    #allocation4 [shape = 's32[1]{0}', space=sflag, size = 0x4, scoped, tag = 'scoped memory for tpu_custom_call.1']
    #allocation5 [shape = 'u8[1024]{0}', space=vmem, size = 0x400, scoped, tag = 'output window, operand 0, single buffered']
    %6 = vsyncpa [#allocation3], 0
    %7 = vsyncpa [#allocation4], 0
    // Predicated region
    $region2: #{tpu_custom_call.1} parent=1 // pred_check
      _
    $region3: #{tpu_custom_call.1} parent=1 // pred_check_branch
      %9 = sbr.rel (0) target = $region5
    $region4: #{tpu_custom_call.1} parent=1 // pred_region
      %s11 = ssub.s32 32, 32
      %12 = vsyncadd [#allocation3], %s11
      %s14 = sshll.u32 [#allocation2], 4
      %s15 = int_to_ptr.vmem [resolvable:$true] %s14
      %17 = dma.hbm_to_vmem [thread:$0]  %s0, 32, %s15, [#allocation3]
    $region5: #{tpu_custom_call.1} parent=1 // pred_fallthru
      _
    // Predicated region
    $region6: #{tpu_custom_call.1} parent=1 // pred_check
      _
    $region7: #{tpu_custom_call.1} parent=1 // pred_check_branch
      %19 = sbr.rel (0) target = $region9
    $region8: #{tpu_custom_call.1} parent=1 // pred_region
      %20 = dma.done [#allocation3], 32
    $region9: #{tpu_custom_call.1} parent=1 // pred_fallthru
      _
    %v21 = vld [vmem:[#allocation2] sm:$0x3]
    %v22 = vmul.f32 %v21, 1e+10
    %24 = vrot.lane.b32.xlu0 %v22, 16
    %v25 = vpop.permute.xlu0 %24
    %v27 = vsub.f32 %v21, %v25
    %29 = vrot.lane.b32.xlu0 %v27, 112
    %v30 = vpop.permute.xlu0 %29
    %vm32 = vcmask 123904
    %33 = vst.msk [vmem:[#allocation5] sm:$0x3] %vm32, %v30
    // Predicated region
    $region10: #{tpu_custom_call.1} parent=1 // pred_check
      _
    $region11: #{tpu_custom_call.1} parent=1 // pred_check_branch
      %35 = sbr.rel (0) target = $region13
    $region12: #{tpu_custom_call.1} parent=1 // pred_region
      %s37 = ssub.s32 32, 32
      %38 = vsyncadd [#allocation4], %s37
      %s40 = sshll.u32 [#allocation5], 4
      %s41 = int_to_ptr.vmem [resolvable:$true] %s40
      %43 = dma.vmem_to_hbm [thread:$0]  %s41, 32, %s1, [#allocation4]
    $region13: #{tpu_custom_call.1} parent=1 // pred_fallthru
      _
    // Predicated region
    $region14: #{tpu_custom_call.1} parent=1 // pred_check
      _
    $region15: #{tpu_custom_call.1} parent=1 // pred_check_branch
      %45 = sbr.rel (0) target = $region17
    $region16: #{tpu_custom_call.1} parent=1 // pred_region
      %46 = dma.done [#allocation4], 32
    $region17: #{tpu_custom_call.1} parent=1 // pred_fallthru
      _
    %47 = vsyncpa [#allocation3], 1
    %48 = vsyncpa [#allocation4], 1

</llo_original>
